<compile_context>
chip_gen: v7x
topology: tpu7x:2x2x1
jax: 0.10.0
libtpu: 0.0.40
codegen_flags: <defaults>
</compile_context>

<pallas_src>
import functools

import jax
import jax.numpy as jnp
from jax.experimental import pallas as pl
from jax.experimental.pallas import tpu as pltpu

_H_PAD = 128      # hidden dim padded to one full lane width
_HEAD_PAD = 128   # fused mu/logvar head output width (lane-dense store)
_NC_PAD = 16      # one-hot width used in-kernel (>= n_classes)


def _round_up(x, m):
    return ((x + m - 1) // m) * m


# ----------------------------------------------------------------------------
# Fused CVAE forward kernel (encoder -> reparameterize -> decoder), one batch
# tile per grid step.
# ----------------------------------------------------------------------------
def _cvae_kernel(x_ref, lab_ref, eps_ref,                        # per-tile activations
                 ew_img_ref, ew_lab_ref, eb1_ref,                # encoder layer 1 (split)
                 ew_head_ref, eb_head_ref,                       # fused mu/logvar head
                 dwz_ref, dwy_ref, db1_ref, dw2_ref, db2_ref,    # decoder
                 mulv_ref, recon_ref):                           # outputs
    f32 = jnp.float32
    bf16 = jnp.bfloat16
    tb = x_ref.shape[0]
    nc_pad = ew_lab_ref.shape[0]
    lat = eps_ref.shape[1]

    # ---- One-hot labels built on-chip (VPU compares; no HBM one-hot stream) ----
    cls = jax.lax.broadcasted_iota(jnp.int32, (tb, nc_pad), 1)
    oh = (cls == lab_ref[...]).astype(bf16)                      # (TB, NC_PAD)

    # ---- Encoder: h = relu(x_flat @ W_img + onehot @ W_lab + b1) ----
    h = (jnp.dot(x_ref[...], ew_img_ref[...], preferred_element_type=f32)
         + jnp.dot(oh, ew_lab_ref[...], preferred_element_type=f32)
         + eb1_ref[...])
    h = jnp.maximum(h, 0.0)                                      # (TB, 128) f32

    # Fused mu/logvar head: columns [0:L]=mu, [L:2L]=logvar, rest zero-pad.
    mulv = (jnp.dot(h.astype(bf16), ew_head_ref[...], preferred_element_type=f32)
            + eb_head_ref[...])
    mulv_ref[...] = mulv                                         # lane-dense (TB, 128)

    mu = mulv[:, :lat]
    logvar = mulv[:, lat:2 * lat]

    # ---- Reparameterization (f32 elementwise) ----
    z = mu + jnp.exp(0.5 * logvar) * eps_ref[...]                # (TB, lat)

    # ---- Decoder: tanh( relu(z @ Wz + onehot @ Wy + b1) @ W2 + b2 ) ----
    # K=lat (=2) contraction done as VPU broadcast-FMAs, not an MXU matmul.
    h2 = (jnp.dot(oh, dwy_ref[...], preferred_element_type=f32)
          + db1_ref[...])
    dwz = dwz_ref[...]                                           # (lat, 128) f32
    for l in range(lat):                                         # static, tiny
        h2 = h2 + z[:, l:l + 1] * dwz[l, :]
    h2 = jnp.maximum(h2, 0.0)                                    # (TB, 128) f32

    y = (jnp.dot(h2.astype(bf16), dw2_ref[...], preferred_element_type=f32)
         + db2_ref[...])
    recon_ref[...] = jnp.tanh(y)                                 # images in [-1, 1]


def cvae_forward_pallas(x_flat, labels2d, eps,
                        ew_img, ew_lab, eb1, ew_head, eb_head,
                        dwz, dwy, db1, dw2, db2, *, tile_b):
    Bp, d_in = x_flat.shape
    lat = eps.shape[1]
    d_out = dw2.shape[1]
    head_w = ew_head.shape[1]
    n_tiles = Bp // tile_b

    tiled = lambda i: (i, 0)   # batch-tiled streams
    const = lambda i: (0, 0)   # weights stay VMEM-resident across steps

    return pl.pallas_call(
        _cvae_kernel,
        out_shape=(jax.ShapeDtypeStruct((Bp, head_w), jnp.float32),
                   jax.ShapeDtypeStruct((Bp, d_out), jnp.float32)),
        grid_spec=pltpu.PrefetchScalarGridSpec(
            num_scalar_prefetch=0,
            grid=(n_tiles,),
            in_specs=[
                pl.BlockSpec((tile_b, d_in), tiled),     # x_flat (bf16)
                pl.BlockSpec((tile_b, 1), tiled),        # labels (int32)
                pl.BlockSpec((tile_b, lat), tiled),      # eps (f32)
                pl.BlockSpec(ew_img.shape, const),
                pl.BlockSpec(ew_lab.shape, const),
                pl.BlockSpec(eb1.shape, const),
                pl.BlockSpec(ew_head.shape, const),
                pl.BlockSpec(eb_head.shape, const),
                pl.BlockSpec(dwz.shape, const),
                pl.BlockSpec(dwy.shape, const),
                pl.BlockSpec(db1.shape, const),
                pl.BlockSpec(dw2.shape, const),
                pl.BlockSpec(db2.shape, const),
            ],
            out_specs=[
                pl.BlockSpec((tile_b, head_w), tiled),
                pl.BlockSpec((tile_b, d_out), tiled),
            ],
        ),
        compiler_params=pltpu.CompilerParams(
            dimension_semantics=("parallel",)),          # independent batch tiles
    )(x_flat, labels2d, eps,
      ew_img, ew_lab, eb1, ew_head, eb_head,
      dwz, dwy, db1, dw2, db2)


# ----------------------------------------------------------------------------
# CVAE wrapper (glue: flatten / pad / eps generation / reshape / param setup)
# ----------------------------------------------------------------------------
class CVAEPallas:
    def __init__(self, key, *, img_ch=1, img_hw=16, n_classes=10,
                 hidden=32, latent_dim=2):
        self.img_ch, self.img_hw = img_ch, img_hw
        self.n_classes, self.hidden, self.latent_dim = n_classes, hidden, latent_dim
        d_in = img_ch * img_hw * img_hw
        self.d_in = d_in
        assert hidden <= _H_PAD and 2 * latent_dim <= _HEAD_PAD and n_classes <= _NC_PAD
        assert d_in % 128 == 0, "flattened image dim must be lane-aligned"

        ks = jax.random.split(key, 8)
        s = 0.05
        f32, bf16 = jnp.float32, jnp.bfloat16

        def pad2(w, rows, cols):
            out = jnp.zeros((rows, cols), f32)
            return out.at[:w.shape[0], :w.shape[1]].set(w.astype(f32))

        # Encoder params: hidden padded to 128; first layer split (image/label).
        w_img = s * jax.random.normal(ks[0], (d_in, hidden))
        w_lab = s * jax.random.normal(ks[1], (n_classes, hidden))
        self.e_w_img = pad2(w_img, d_in, _H_PAD).astype(bf16)
        self.e_w_lab = pad2(w_lab, _NC_PAD, _H_PAD).astype(bf16)
        self.e_b1 = jnp.zeros((1, _H_PAD), f32)

        # Fused + lane-padded mu/logvar head: cols [0:L]=mu, [L:2L]=logvar.
        wmu = s * jax.random.normal(ks[2], (hidden, latent_dim))
        wlv = s * jax.random.normal(ks[3], (hidden, latent_dim))
        head = (jnp.zeros((_H_PAD, _HEAD_PAD), f32)
                .at[:hidden, :latent_dim].set(wmu.astype(f32))
                .at[:hidden, latent_dim:2 * latent_dim].set(wlv.astype(f32)))
        self.e_w_head = head.astype(bf16)
        self.e_b_head = jnp.zeros((1, _HEAD_PAD), f32)

        # Decoder params (first layer split into z-part and label-part).
        w_z = s * jax.random.normal(ks[4], (latent_dim, hidden))
        w_y = s * jax.random.normal(ks[5], (n_classes, hidden))
        self.d_wz = pad2(w_z, latent_dim, _H_PAD)                # f32: used in VPU FMA
        self.d_wy = pad2(w_y, _NC_PAD, _H_PAD).astype(bf16)
        self.d_b1 = jnp.zeros((1, _H_PAD), f32)
        w2 = s * jax.random.normal(ks[6], (hidden, d_in))
        self.d_w2 = pad2(w2, _H_PAD, d_in).astype(bf16)
        self.d_b2 = jnp.zeros((1, d_in), f32)

    @functools.partial(jax.jit, static_argnums=0)
    def forward(self, inputs, labels, seed):
        """inputs: (B, C, H, W) NCHW f32; labels: (B,) int; seed: int32 scalar."""
        B = inputs.shape[0]
        tile_b = min(256, _round_up(B, 8))       # batch tile (multiple of 8 sublanes)
        Bp = _round_up(B, tile_b)
        L = self.latent_dim

        x_flat = inputs.reshape(B, -1).astype(jnp.bfloat16)      # halve HBM read
        lab = labels.astype(jnp.int32).reshape(B, 1)
        if Bp != B:
            x_flat = jnp.pad(x_flat, ((0, Bp - B), (0, 0)))
            lab = jnp.pad(lab, ((0, Bp - B), (0, 0)))

        # eps generated in the wrapper (pltpu PRNG has no CPU/interpret lowering).
        key = jax.random.PRNGKey(jnp.asarray(seed, jnp.int32))
        eps = jax.random.normal(key, (Bp, L), dtype=jnp.float32)

        mulv, recon_flat = cvae_forward_pallas(
            x_flat, lab, eps,
            self.e_w_img, self.e_w_lab, self.e_b1, self.e_w_head, self.e_b_head,
            self.d_wz, self.d_wy, self.d_b1, self.d_w2, self.d_b2,
            tile_b=tile_b)

        mu = mulv[:B, :L]
        logvar = mulv[:B, L:2 * L]
        recon = recon_flat[:B].reshape(B, self.img_ch, self.img_hw, self.img_hw)
        return [mu, logvar, recon]


if __name__ == "__main__":
    key = jax.random.PRNGKey(0)
    k_param, k_img, k_lab = jax.random.split(key, 3)

    model = CVAEPallas(k_param, img_ch=1, img_hw=16, n_classes=10,
                       hidden=32, latent_dim=2)

    B = 2
    inputs = jax.random.normal(k_img, (B, 1, 16, 16), dtype=jnp.float32)   # NCHW
    labels = jax.random.randint(k_lab, (B,), 0, 10, dtype=jnp.int32)

    mu, logvar, recon = model.forward(inputs, labels, jnp.int32(42))
    jax.block_until_ready((mu, logvar, recon))

    assert mu.shape == (B, 2) and logvar.shape == (B, 2)
    assert recon.shape == (B, 1, 16, 16)
    assert jnp.all(jnp.isfinite(mu)) and jnp.all(jnp.isfinite(logvar))
    assert jnp.all(jnp.isfinite(recon))
    assert jnp.all(jnp.abs(recon) <= 1.0)      # tanh output range
    print("KERNEL_OK")
</pallas_src>

<mosaic_0001>
module attributes {stable_mosaic.version = 11 : i64} {
  func.func @_cvae_kernel(%arg0: i32, %arg1: memref<8x256xbf16, #tpu.memory_space<vmem>>, %arg2: memref<8x1xi32, #tpu.memory_space<vmem>>, %arg3: memref<8x2xf32, #tpu.memory_space<vmem>>, %arg4: memref<256x128xbf16, #tpu.memory_space<vmem>>, %arg5: memref<16x128xbf16, #tpu.memory_space<vmem>>, %arg6: memref<1x128xf32, #tpu.memory_space<vmem>>, %arg7: memref<128x128xbf16, #tpu.memory_space<vmem>>, %arg8: memref<1x128xf32, #tpu.memory_space<vmem>>, %arg9: memref<2x128xf32, #tpu.memory_space<vmem>>, %arg10: memref<16x128xbf16, #tpu.memory_space<vmem>>, %arg11: memref<1x128xf32, #tpu.memory_space<vmem>>, %arg12: memref<128x256xbf16, #tpu.memory_space<vmem>>, %arg13: memref<1x256xf32, #tpu.memory_space<vmem>>, %arg14: memref<8x128xf32, #tpu.memory_space<vmem>>, %arg15: memref<8x256xf32, #tpu.memory_space<vmem>>) attributes {dimension_semantics = [#tpu.dimension_semantics<parallel>], iteration_bounds = array<i64: 1>, scalar_prefetch = 0 : i64, scratch_operands = 0 : i64, tpu.core_type = #tpu.core_type<tc>, window_params = [{transform_indices = @transform_0, window_bounds = array<i64: 8, 256>}, {transform_indices = @transform_1, window_bounds = array<i64: 8, 1>}, {transform_indices = @transform_2, window_bounds = array<i64: 8, 2>}, {pipeline_mode = #tpu.pipeline_mode<synchronous>, transform_indices = @transform_3, window_bounds = array<i64: 256, 128>}, {pipeline_mode = #tpu.pipeline_mode<synchronous>, transform_indices = @transform_4, window_bounds = array<i64: 16, 128>}, {pipeline_mode = #tpu.pipeline_mode<synchronous>, transform_indices = @transform_5, window_bounds = array<i64: 1, 128>}, {pipeline_mode = #tpu.pipeline_mode<synchronous>, transform_indices = @transform_6, window_bounds = array<i64: 128, 128>}, {pipeline_mode = #tpu.pipeline_mode<synchronous>, transform_indices = @transform_7, window_bounds = array<i64: 1, 128>}, {pipeline_mode = #tpu.pipeline_mode<synchronous>, transform_indices = @transform_8, window_bounds = array<i64: 2, 128>}, {pipeline_mode = #tpu.pipeline_mode<synchronous>, transform_indices = @transform_9, window_bounds = array<i64: 16, 128>}, {pipeline_mode = #tpu.pipeline_mode<synchronous>, transform_indices = @transform_10, window_bounds = array<i64: 1, 128>}, {pipeline_mode = #tpu.pipeline_mode<synchronous>, transform_indices = @transform_11, window_bounds = array<i64: 128, 256>}, {pipeline_mode = #tpu.pipeline_mode<synchronous>, transform_indices = @transform_12, window_bounds = array<i64: 1, 256>}, {transform_indices = @transform_13, window_bounds = array<i64: 8, 128>}, {transform_indices = @transform_14, window_bounds = array<i64: 8, 256>}]} {
    %0 = tpu.iota {dimensions = array<i32: 1>} : vector<8x16xi32>
    %c0 = arith.constant 0 : index
    %c0_0 = arith.constant 0 : index
    %1 = vector.load %arg2[%c0, %c0_0] : memref<8x1xi32, #tpu.memory_space<vmem>>, vector<8x1xi32>
    %2 = vector.broadcast %1 : vector<8x1xi32> to vector<8x16xi32>
    %3 = arith.cmpi eq, %0, %2 : vector<8x16xi32>
    %4 = arith.extui %3 : vector<8x16xi1> to vector<8x16xi32>
    %5 = arith.sitofp %4 : vector<8x16xi32> to vector<8x16xf32>
    %6 = arith.truncf %5 : vector<8x16xf32> to vector<8x16xbf16>
    %c0_1 = arith.constant 0 : index
    %c0_2 = arith.constant 0 : index
    %7 = vector.load %arg1[%c0_1, %c0_2] : memref<8x256xbf16, #tpu.memory_space<vmem>>, vector<8x256xbf16>
    %c0_3 = arith.constant 0 : index
    %c0_4 = arith.constant 0 : index
    %8 = vector.load %arg4[%c0_3, %c0_4] : memref<256x128xbf16, #tpu.memory_space<vmem>>, vector<256x128xbf16>
    %cst = arith.constant dense<0.000000e+00> : vector<8x128xf32>
    %9 = tpu.matmul %7, %8, %cst {dimension_numbers = #tpu.dot_dimension_numbers<[1], [0], [0], [1], [0, 0, 1, 1], [], []>} : vector<8x256xbf16>, vector<256x128xbf16>, vector<8x128xf32> -> vector<8x128xf32>
    %c0_5 = arith.constant 0 : index
    %c0_6 = arith.constant 0 : index
    %10 = vector.load %arg5[%c0_5, %c0_6] : memref<16x128xbf16, #tpu.memory_space<vmem>>, vector<16x128xbf16>
    %cst_7 = arith.constant dense<0.000000e+00> : vector<8x128xf32>
    %11 = tpu.matmul %6, %10, %cst_7 {dimension_numbers = #tpu.dot_dimension_numbers<[1], [0], [0], [1], [0, 0, 1, 1], [], []>} : vector<8x16xbf16>, vector<16x128xbf16>, vector<8x128xf32> -> vector<8x128xf32>
    %12 = arith.addf %9, %11 : vector<8x128xf32>
    %c0_8 = arith.constant 0 : index
    %c0_9 = arith.constant 0 : index
    %13 = vector.load %arg6[%c0_8, %c0_9] : memref<1x128xf32, #tpu.memory_space<vmem>>, vector<1x128xf32>
    %14 = vector.broadcast %13 : vector<1x128xf32> to vector<8x128xf32>
    %15 = arith.addf %12, %14 : vector<8x128xf32>
    %cst_10 = arith.constant 0.000000e+00 : f32
    %16 = vector.broadcast %cst_10 : f32 to vector<8x128xf32>
    %17 = arith.maximumf %15, %16 : vector<8x128xf32>
    %18 = arith.truncf %17 : vector<8x128xf32> to vector<8x128xbf16>
    %c0_11 = arith.constant 0 : index
    %c0_12 = arith.constant 0 : index
    %19 = vector.load %arg7[%c0_11, %c0_12] : memref<128x128xbf16, #tpu.memory_space<vmem>>, vector<128x128xbf16>
    %cst_13 = arith.constant dense<0.000000e+00> : vector<8x128xf32>
    %20 = tpu.matmul %18, %19, %cst_13 {dimension_numbers = #tpu.dot_dimension_numbers<[1], [0], [0], [1], [0, 0, 1, 1], [], []>} : vector<8x128xbf16>, vector<128x128xbf16>, vector<8x128xf32> -> vector<8x128xf32>
    %c0_14 = arith.constant 0 : index
    %c0_15 = arith.constant 0 : index
    %21 = vector.load %arg8[%c0_14, %c0_15] : memref<1x128xf32, #tpu.memory_space<vmem>>, vector<1x128xf32>
    %22 = vector.broadcast %21 : vector<1x128xf32> to vector<8x128xf32>
    %23 = arith.addf %20, %22 : vector<8x128xf32>
    %c0_16 = arith.constant 0 : index
    %c0_17 = arith.constant 0 : index
    %24 = vector.load %arg14[%c0_16, %c0_17] : memref<8x128xf32, #tpu.memory_space<vmem>>, vector<8x128xf32>
    tpu.vector_store %arg14[%c0_16, %c0_17], %23 {strides = array<i32>} : memref<8x128xf32, #tpu.memory_space<vmem>>, vector<8x128xf32>,
    %25 = vector.extract_strided_slice %23 {offsets = [0, 0], sizes = [8, 2], strides = [1, 1]} : vector<8x128xf32> to vector<8x2xf32>
    %26 = vector.extract_strided_slice %23 {offsets = [0, 2], sizes = [8, 2], strides = [1, 1]} : vector<8x128xf32> to vector<8x2xf32>
    %cst_18 = arith.constant 5.000000e-01 : f32
    %27 = vector.broadcast %cst_18 : f32 to vector<8x2xf32>
    %28 = arith.mulf %27, %26 : vector<8x2xf32>
    %29 = math.exp %28 : vector<8x2xf32>
    %c0_19 = arith.constant 0 : index
    %c0_20 = arith.constant 0 : index
    %30 = vector.load %arg3[%c0_19, %c0_20] : memref<8x2xf32, #tpu.memory_space<vmem>>, vector<8x2xf32>
    %31 = arith.mulf %29, %30 : vector<8x2xf32>
    %32 = arith.addf %25, %31 : vector<8x2xf32>
    %c0_21 = arith.constant 0 : index
    %c0_22 = arith.constant 0 : index
    %33 = vector.load %arg10[%c0_21, %c0_22] : memref<16x128xbf16, #tpu.memory_space<vmem>>, vector<16x128xbf16>
    %cst_23 = arith.constant dense<0.000000e+00> : vector<8x128xf32>
    %34 = tpu.matmul %6, %33, %cst_23 {dimension_numbers = #tpu.dot_dimension_numbers<[1], [0], [0], [1], [0, 0, 1, 1], [], []>} : vector<8x16xbf16>, vector<16x128xbf16>, vector<8x128xf32> -> vector<8x128xf32>
    %c0_24 = arith.constant 0 : index
    %c0_25 = arith.constant 0 : index
    %35 = vector.load %arg11[%c0_24, %c0_25] : memref<1x128xf32, #tpu.memory_space<vmem>>, vector<1x128xf32>
    %36 = vector.broadcast %35 : vector<1x128xf32> to vector<8x128xf32>
    %37 = arith.addf %34, %36 : vector<8x128xf32>
    %c0_26 = arith.constant 0 : index
    %c0_27 = arith.constant 0 : index
    %38 = vector.load %arg9[%c0_26, %c0_27] : memref<2x128xf32, #tpu.memory_space<vmem>>, vector<2x128xf32>
    %39 = vector.extract_strided_slice %32 {offsets = [0, 0], sizes = [8, 1], strides = [1, 1]} : vector<8x2xf32> to vector<8x1xf32>
    %40 = vector.extract_strided_slice %38 {offsets = [0, 0], sizes = [1, 128], strides = [1, 1]} : vector<2x128xf32> to vector<1x128xf32>
    %41 = vector.shape_cast %40 : vector<1x128xf32> to vector<128xf32>
    %42 = vector.shape_cast %41 : vector<128xf32> to vector<1x128xf32>
    %43 = vector.broadcast %39 : vector<8x1xf32> to vector<8x128xf32>
    %44 = vector.broadcast %42 : vector<1x128xf32> to vector<8x128xf32>
    %45 = arith.mulf %43, %44 : vector<8x128xf32>
    %46 = arith.addf %37, %45 : vector<8x128xf32>
    %47 = vector.extract_strided_slice %32 {offsets = [0, 1], sizes = [8, 1], strides = [1, 1]} : vector<8x2xf32> to vector<8x1xf32>
    %48 = vector.extract_strided_slice %38 {offsets = [1, 0], sizes = [1, 128], strides = [1, 1]} : vector<2x128xf32> to vector<1x128xf32>
    %49 = vector.shape_cast %48 : vector<1x128xf32> to vector<128xf32>
    %50 = vector.shape_cast %49 : vector<128xf32> to vector<1x128xf32>
    %51 = vector.broadcast %47 : vector<8x1xf32> to vector<8x128xf32>
    %52 = vector.broadcast %50 : vector<1x128xf32> to vector<8x128xf32>
    %53 = arith.mulf %51, %52 : vector<8x128xf32>
    %54 = arith.addf %46, %53 : vector<8x128xf32>
    %cst_28 = arith.constant 0.000000e+00 : f32
    %55 = vector.broadcast %cst_28 : f32 to vector<8x128xf32>
    %56 = arith.maximumf %54, %55 : vector<8x128xf32>
    %57 = arith.truncf %56 : vector<8x128xf32> to vector<8x128xbf16>
    %c0_29 = arith.constant 0 : index
    %c0_30 = arith.constant 0 : index
    %58 = vector.load %arg12[%c0_29, %c0_30] : memref<128x256xbf16, #tpu.memory_space<vmem>>, vector<128x256xbf16>
    %cst_31 = arith.constant dense<0.000000e+00> : vector<8x256xf32>
    %59 = tpu.matmul %57, %58, %cst_31 {dimension_numbers = #tpu.dot_dimension_numbers<[1], [0], [0], [1], [0, 0, 1, 1], [], []>} : vector<8x128xbf16>, vector<128x256xbf16>, vector<8x256xf32> -> vector<8x256xf32>
    %c0_32 = arith.constant 0 : index
    %c0_33 = arith.constant 0 : index
    %60 = vector.load %arg13[%c0_32, %c0_33] : memref<1x256xf32, #tpu.memory_space<vmem>>, vector<1x256xf32>
    %61 = vector.broadcast %60 : vector<1x256xf32> to vector<8x256xf32>
    %62 = arith.addf %59, %61 : vector<8x256xf32>
    %63 = math.tanh %62 : vector<8x256xf32>
    %c0_34 = arith.constant 0 : index
    %c0_35 = arith.constant 0 : index
    %64 = vector.load %arg15[%c0_34, %c0_35] : memref<8x256xf32, #tpu.memory_space<vmem>>, vector<8x256xf32>
    tpu.vector_store %arg15[%c0_34, %c0_35], %63 {strides = array<i32>} : memref<8x256xf32, #tpu.memory_space<vmem>>, vector<8x256xf32>,
    return
  }
  func.func @transform_0(%arg0: i32) -> (i32, i32) {
    %c0_i32 = arith.constant 0 : i32
    %c0_i32_0 = arith.constant 0 : i32
    return %arg0, %c0_i32 : i32, i32
  }
  func.func @transform_1(%arg0: i32) -> (i32, i32) {
    %c0_i32 = arith.constant 0 : i32
    %c0_i32_0 = arith.constant 0 : i32
    return %arg0, %c0_i32 : i32, i32
  }
  func.func @transform_2(%arg0: i32) -> (i32, i32) {
    %c0_i32 = arith.constant 0 : i32
    %c0_i32_0 = arith.constant 0 : i32
    return %arg0, %c0_i32 : i32, i32
  }
  func.func @transform_3(%arg0: i32) -> (i32, i32) {
    %c0_i32 = arith.constant 0 : i32
    %c0_i32_0 = arith.constant 0 : i32
    %c0_i32_1 = arith.constant 0 : i32
    return %c0_i32, %c0_i32_0 : i32, i32
  }
  func.func @transform_4(%arg0: i32) -> (i32, i32) {
    %c0_i32 = arith.constant 0 : i32
    %c0_i32_0 = arith.constant 0 : i32
    %c0_i32_1 = arith.constant 0 : i32
    return %c0_i32, %c0_i32_0 : i32, i32
  }
  func.func @transform_5(%arg0: i32) -> (i32, i32) {
    %c0_i32 = arith.constant 0 : i32
    %c0_i32_0 = arith.constant 0 : i32
    %c0_i32_1 = arith.constant 0 : i32
    return %c0_i32, %c0_i32_0 : i32, i32
  }
  func.func @transform_6(%arg0: i32) -> (i32, i32) {
    %c0_i32 = arith.constant 0 : i32
    %c0_i32_0 = arith.constant 0 : i32
    %c0_i32_1 = arith.constant 0 : i32
    return %c0_i32, %c0_i32_0 : i32, i32
  }
  func.func @transform_7(%arg0: i32) -> (i32, i32) {
    %c0_i32 = arith.constant 0 : i32
    %c0_i32_0 = arith.constant 0 : i32
    %c0_i32_1 = arith.constant 0 : i32
    return %c0_i32, %c0_i32_0 : i32, i32
  }
  func.func @transform_8(%arg0: i32) -> (i32, i32) {
    %c0_i32 = arith.constant 0 : i32
    %c0_i32_0 = arith.constant 0 : i32
    %c0_i32_1 = arith.constant 0 : i32
    return %c0_i32, %c0_i32_0 : i32, i32
  }
  func.func @transform_9(%arg0: i32) -> (i32, i32) {
    %c0_i32 = arith.constant 0 : i32
    %c0_i32_0 = arith.constant 0 : i32
    %c0_i32_1 = arith.constant 0 : i32
    return %c0_i32, %c0_i32_0 : i32, i32
  }
  func.func @transform_10(%arg0: i32) -> (i32, i32) {
    %c0_i32 = arith.constant 0 : i32
    %c0_i32_0 = arith.constant 0 : i32
    %c0_i32_1 = arith.constant 0 : i32
    return %c0_i32, %c0_i32_0 : i32, i32
  }
  func.func @transform_11(%arg0: i32) -> (i32, i32) {
    %c0_i32 = arith.constant 0 : i32
    %c0_i32_0 = arith.constant 0 : i32
    %c0_i32_1 = arith.constant 0 : i32
    return %c0_i32, %c0_i32_0 : i32, i32
  }
  func.func @transform_12(%arg0: i32) -> (i32, i32) {
    %c0_i32 = arith.constant 0 : i32
    %c0_i32_0 = arith.constant 0 : i32
    %c0_i32_1 = arith.constant 0 : i32
    return %c0_i32, %c0_i32_0 : i32, i32
  }
  func.func @transform_13(%arg0: i32) -> (i32, i32) {
    %c0_i32 = arith.constant 0 : i32
    %c0_i32_0 = arith.constant 0 : i32
    return %arg0, %c0_i32 : i32, i32
  }
  func.func @transform_14(%arg0: i32) -> (i32, i32) {
    %c0_i32 = arith.constant 0 : i32
    %c0_i32_0 = arith.constant 0 : i32
    return %arg0, %c0_i32 : i32, i32
  }
}

</mosaic_0001>

<llo_original>
// kernel: forward.1
$region0: #{forward.1}
  #allocation0 [shape = 'u32[]', space=smem, size = 0x4, offset = 0x4, fixed_abs, tag = 'smem constant byte address 0x4 - core index']
  #allocation1 [shape = 'u32[144,128]{1,0:T(1,128)}', space=vmem, size = 0x12000, scoped, tag = 'internal scratch']
  %s0 = inlined_call_operand.vmem [shape: bf16[8,256], index: 0, kind: input, shape index: {}]
  %s1 = inlined_call_operand.vmem [shape: s32[8,1], index: 1, kind: input, shape index: {}]
  %s2 = inlined_call_operand.vmem [shape: f32[8,2], index: 2, kind: input, shape index: {}]
  %s3 = inlined_call_operand.vmem [shape: bf16[256,128], index: 3, kind: input, shape index: {}]
  %s4 = inlined_call_operand.vmem [shape: bf16[16,128], index: 4, kind: input, shape index: {}]
  %s5 = inlined_call_operand.vmem [shape: f32[1,128], index: 5, kind: input, shape index: {}, may-alias: {5,7,10}]
  %s6 = inlined_call_operand.vmem [shape: bf16[128,128], index: 6, kind: input, shape index: {}]
  %s7 = inlined_call_operand.vmem [shape: f32[1,128], index: 7, kind: input, shape index: {}, may-alias: {5,7,10}]
  %s8 = inlined_call_operand.vmem [shape: f32[2,128], index: 8, kind: input, shape index: {}]
  %s9 = inlined_call_operand.vmem [shape: bf16[16,128], index: 9, kind: input, shape index: {}]
  %s10 = inlined_call_operand.vmem [shape: f32[1,128], index: 10, kind: input, shape index: {}, may-alias: {5,7,10}]
  %s11 = inlined_call_operand.vmem [shape: bf16[128,256], index: 11, kind: input, shape index: {}]
  %s12 = inlined_call_operand.vmem [shape: f32[1,256], index: 12, kind: input, shape index: {}]
  %s13 = inlined_call_operand.vmem [shape: f32[8,128], index: 13, kind: output, shape index: {0}]
  %s14 = inlined_call_operand.vmem [shape: f32[8,256], index: 14, kind: output, shape index: {1}]
  %15 = xla_tuple %s13, %s14
  %s16 = sld [smem:[#allocation0]]
  $region70: #{forward.1} parent=0
    _
  %s18 = ssub.s32 1, %s16
  %s19 = scalar_select 0, %s18, %s16
  // Predicated region
  $region2: #{forward.1} parent=0 // pred_check
    _
  $region3: #{forward.1} parent=0 // pred_check_branch
    %21 = sbr.rel (0) target = $region5
  $region4: #{forward.1} parent=0 // pred_region
    _
  $region5: #{forward.1} parent=0 // pred_fallthru
    _
  // Predicated region
  $region6: #{forward.1} parent=0 // pred_check
    _
  $region7: #{forward.1} parent=0 // pred_check_branch
    %23 = sbr.rel (0) target = $region9
  $region8: #{forward.1} parent=0 // pred_region
    _
  $region9: #{forward.1} parent=0 // pred_fallthru
    _
  // Predicated region
  $region10: #{forward.1} parent=0 // pred_check
    _
  $region11: #{forward.1} parent=0 // pred_check_branch
    %25 = sbr.rel (0) target = $region13
  $region12: #{forward.1} parent=0 // pred_region
    _
  $region13: #{forward.1} parent=0 // pred_fallthru
    _
  // Predicated region
  $region14: #{forward.1} parent=0 // pred_check
    _
  $region15: #{forward.1} parent=0 // pred_check_branch
    %27 = sbr.rel (0) target = $region17
  $region16: #{forward.1} parent=0 // pred_region
    _
  $region17: #{forward.1} parent=0 // pred_fallthru
    _
  // Predicated region
  $region18: #{forward.1} parent=0 // pred_check
    _
  $region19: #{forward.1} parent=0 // pred_check_branch
    %29 = sbr.rel (0) target = $region21
  $region20: #{forward.1} parent=0 // pred_region
    _
  $region21: #{forward.1} parent=0 // pred_fallthru
    _
  // Predicated region
  $region22: #{forward.1} parent=0 // pred_check
    _
  $region23: #{forward.1} parent=0 // pred_check_branch
    %31 = sbr.rel (0) target = $region25
  $region24: #{forward.1} parent=0 // pred_region
    _
  $region25: #{forward.1} parent=0 // pred_fallthru
    _
  // Predicated region
  $region26: #{forward.1} parent=0 // pred_check
    _
  $region27: #{forward.1} parent=0 // pred_check_branch
    %33 = sbr.rel (0) target = $region29
  $region28: #{forward.1} parent=0 // pred_region
    _
  $region29: #{forward.1} parent=0 // pred_fallthru
    _
  // Predicated region
  $region30: #{forward.1} parent=0 // pred_check
    _
  $region31: #{forward.1} parent=0 // pred_check_branch
    %35 = sbr.rel (0) target = $region33
  $region32: #{forward.1} parent=0 // pred_region
    _
  $region33: #{forward.1} parent=0 // pred_fallthru
    _
  // Predicated region
  $region34: #{forward.1} parent=0 // pred_check
    _
  $region35: #{forward.1} parent=0 // pred_check_branch
    %37 = sbr.rel (0) target = $region37
  $region36: #{forward.1} parent=0 // pred_region
    _
  $region37: #{forward.1} parent=0 // pred_fallthru
    _
  // Predicated region
  $region38: #{forward.1} parent=0 // pred_check
    _
  $region39: #{forward.1} parent=0 // pred_check_branch
    %39 = sbr.rel (0) target = $region41
  $region40: #{forward.1} parent=0 // pred_region
    _
  $region41: #{forward.1} parent=0 // pred_fallthru
    _
  // Predicated region
  $region42: #{forward.1} parent=0 // pred_check
    _
  $region43: #{forward.1} parent=0 // pred_check_branch
    %41 = sbr.rel (0) target = $region45
  $region44: #{forward.1} parent=0 // pred_region
    _
  $region45: #{forward.1} parent=0 // pred_fallthru
    _
  // Predicated region
  $region46: #{forward.1} parent=0 // pred_check
    _
  $region47: #{forward.1} parent=0 // pred_check_branch
    %43 = sbr.rel (0) target = $region49
  $region48: #{forward.1} parent=0 // pred_region
    _
  $region49: #{forward.1} parent=0 // pred_fallthru
    _
  // Predicated region
  $region50: #{forward.1} parent=0 // pred_check
    _
  $region51: #{forward.1} parent=0 // pred_check_branch
    %45 = sbr.rel (0) target = $region53
  $region52: #{forward.1} parent=0 // pred_region
    _
  $region53: #{forward.1} parent=0 // pred_fallthru
    _
  %v47 = vlaneseq
  %v48 = vand.u32 %v47, 127
  %v49 = vld [vmem:[%s1] sm:$0xff]
  %50 = vset.pattern.permute.xlu0 0
  %51 = vperm.xlu0 %50, %v49
  %v52 = vpop.permute.xlu0 %51
  %vm53 = vcmp.eq.s32.totalorder %v48, %v52
  %v54 = vsel %vm53, 1, 0
  %v55 = vcvt.s32.f32 %v54
  %v56 = vpack.c.bf16 %v55, %v55
  %v57 = vld [vmem:[%s0] sm:$0xff]
  %v58 = vld [vmem:[%s3] sm:$0xf]
  %v59 = vld [vmem:[%s3 + $0x4] sm:$0xf]
  %v60 = vld [vmem:[%s3 + $0x8] sm:$0xf]
  %v61 = vld [vmem:[%s3 + $0xc] sm:$0xf]
  %v62 = vld [vmem:[%s3 + $0x10] sm:$0xf]
  %v63 = vld [vmem:[%s3 + $0x14] sm:$0xf]
  %v64 = vld [vmem:[%s3 + $0x18] sm:$0xf]
  %v65 = vld [vmem:[%s3 + $0x1c] sm:$0xf]
  %v66 = vld [vmem:[%s3 + $0x20] sm:$0xf]
  %v67 = vld [vmem:[%s3 + $0x24] sm:$0xf]
  %v68 = vld [vmem:[%s3 + $0x28] sm:$0xf]
  %v69 = vld [vmem:[%s3 + $0x2c] sm:$0xf]
  %v70 = vld [vmem:[%s3 + $0x30] sm:$0xf]
  %v71 = vld [vmem:[%s3 + $0x34] sm:$0xf]
  %v72 = vld [vmem:[%s3 + $0x38] sm:$0xf]
  %v73 = vld [vmem:[%s3 + $0x3c] sm:$0xf]
  %v74 = vld [vmem:[%s3 + $0x40] sm:$0xf]
  %v75 = vld [vmem:[%s3 + $0x44] sm:$0xf]
  %v76 = vld [vmem:[%s3 + $0x48] sm:$0xf]
  %v77 = vld [vmem:[%s3 + $0x4c] sm:$0xf]
  %v78 = vld [vmem:[%s3 + $0x50] sm:$0xf]
  %v79 = vld [vmem:[%s3 + $0x54] sm:$0xf]
  %v80 = vld [vmem:[%s3 + $0x58] sm:$0xf]
  %v81 = vld [vmem:[%s3 + $0x5c] sm:$0xf]
  %v82 = vld [vmem:[%s3 + $0x60] sm:$0xf]
  %v83 = vld [vmem:[%s3 + $0x64] sm:$0xf]
  %v84 = vld [vmem:[%s3 + $0x68] sm:$0xf]
  %v85 = vld [vmem:[%s3 + $0x6c] sm:$0xf]
  %v86 = vld [vmem:[%s3 + $0x70] sm:$0xf]
  %v87 = vld [vmem:[%s3 + $0x74] sm:$0xf]
  %v88 = vld [vmem:[%s3 + $0x78] sm:$0xf]
  %v89 = vld [vmem:[%s3 + $0x7c] sm:$0xf]
  %v90 = vld [vmem:[%s4] sm:$0xf]
  %v91 = vld [vmem:[%s4 + $0x4] sm:$0xf]
  %v94 = vunpack.c.l.b16 %v90
  %v95 = vunpack.c.l.b16 %v91
  %v96 = vpack.c.b16 %v95, %v94
  %vm98 = vcmask 130048
  %v100 = vsel %vm98, %v56, 0
  %102 = vmatprep.subr.bf16.mxu0 0
  %103 = vmatpush1.bf16.msra.mxu0 %v96
  %104 = vmatprep.subr.bf16.mxu0 0
  %105 = vmatpush1.bf16.msra.mxu0 0
  %106 = vmatprep.subr.bf16.mxu0 0
  %107 = vmatpush1.bf16.msra.mxu0 0
  %108 = vmatprep.subr.bf16.mxu0 0
  %109 = vmatpush1.bf16.msra.mxu0 0
  %110 = vmatprep.subr.bf16.mxu0 0
  %111 = vmatpush1.bf16.msra.mxu0 0
  %112 = vmatprep.subr.bf16.mxu0 0
  %113 = vmatpush1.bf16.msra.mxu0 0
  %114 = vmatprep.subr.bf16.mxu0 0
  %115 = vmatpush1.bf16.msra.mxu0 0
  %116 = vmatprep.subr.bf16.mxu0 0
  %117 = vmatpush1.bf16.msra.mxu0 0
  %118 = vmatprep.subr.bf16.mxu0 0
  %119 = vmatpush1.bf16.msra.mxu0 0
  %120 = vmatprep.subr.bf16.mxu0 0
  %121 = vmatpush1.bf16.msra.mxu0 0
  %122 = vmatprep.subr.bf16.mxu0 0
  %123 = vmatpush1.bf16.msra.mxu0 0
  %124 = vmatprep.subr.bf16.mxu0 0
  %125 = vmatpush1.bf16.msra.mxu0 0
  %126 = vmatprep.subr.bf16.mxu0 0
  %127 = vmatpush1.bf16.msra.mxu0 0
  %128 = vmatprep.subr.bf16.mxu0 0
  %129 = vmatpush1.bf16.msra.mxu0 0
  %130 = vmatprep.subr.bf16.mxu0 0
  %131 = vmatpush1.bf16.msra.mxu0 0
  %132 = vmatprep.subr.bf16.mxu0 0
  %133 = vmatpush1.bf16.msra.mxu0 0
  %134 = vmatprep.mubr.bf16.mxu0 0
  %135 = vmatmul.mubr.bf16.gmra.mrb[0].mxu0 %v100
  %v136 = vpop.f32.mrb[0].mxu0
  %v137 = vadd.f32 0.0, %v136
  %v138 = vpop.f32.mrb[0].mxu0
  %v139 = vpop.f32.mrb[0].mxu0
  %v140 = vpop.f32.mrb[0].mxu0
  %141 = vdwg.mxu0
  %v143 = vunpack.c.l.b16 %v57
  %v144 = vunpack.c.h.b16 %v57
  %v145 = vpack.c.b16 %v143, %v143
  %v146 = vpack.c.b16 %v144, %v144
  %v181 = vunpack.c.l.b16 %v58
  %v182 = vunpack.c.l.b16 %v59
  %v183 = vunpack.c.l.b16 %v60
  %v184 = vunpack.c.l.b16 %v61
  %v185 = vunpack.c.l.b16 %v62
  %v186 = vunpack.c.l.b16 %v63
  %v187 = vunpack.c.l.b16 %v64
  %v188 = vunpack.c.l.b16 %v65
  %v189 = vunpack.c.l.b16 %v66
  %v190 = vunpack.c.l.b16 %v67
  %v191 = vunpack.c.l.b16 %v68
  %v192 = vunpack.c.l.b16 %v69
  %v193 = vunpack.c.l.b16 %v70
  %v194 = vunpack.c.l.b16 %v71
  %v195 = vunpack.c.l.b16 %v72
  %v196 = vunpack.c.l.b16 %v73
  %v197 = vunpack.c.l.b16 %v74
  %v198 = vunpack.c.l.b16 %v75
  %v199 = vunpack.c.l.b16 %v76
  %v200 = vunpack.c.l.b16 %v77
  %v201 = vunpack.c.l.b16 %v78
  %v202 = vunpack.c.l.b16 %v79
  %v203 = vunpack.c.l.b16 %v80
  %v204 = vunpack.c.l.b16 %v81
  %v205 = vunpack.c.l.b16 %v82
  %v206 = vunpack.c.l.b16 %v83
  %v207 = vunpack.c.l.b16 %v84
  %v208 = vunpack.c.l.b16 %v85
  %v209 = vunpack.c.l.b16 %v86
  %v210 = vunpack.c.l.b16 %v87
  %v211 = vunpack.c.l.b16 %v88
  %v212 = vunpack.c.l.b16 %v89
  %v213 = vpack.c.b16 %v182, %v181
  %v214 = vpack.c.b16 %v184, %v183
  %v215 = vpack.c.b16 %v186, %v185
  %v216 = vpack.c.b16 %v188, %v187
  %v217 = vpack.c.b16 %v190, %v189
  %v218 = vpack.c.b16 %v192, %v191
  %v219 = vpack.c.b16 %v194, %v193
  %v220 = vpack.c.b16 %v196, %v195
  %v221 = vpack.c.b16 %v198, %v197
  %v222 = vpack.c.b16 %v200, %v199
  %v223 = vpack.c.b16 %v202, %v201
  %v224 = vpack.c.b16 %v204, %v203
  %v225 = vpack.c.b16 %v206, %v205
  %v226 = vpack.c.b16 %v208, %v207
  %v227 = vpack.c.b16 %v210, %v209
  %v228 = vpack.c.b16 %v212, %v211
  %245 = vmatprep.subr.bf16.mxu0 0
  %246 = vmatpush1.bf16.msra.mxu0 %v213
  %247 = vmatprep.subr.bf16.mxu0 0
  %248 = vmatpush1.bf16.msra.mxu0 %v214
  %249 = vmatprep.subr.bf16.mxu0 0
  %250 = vmatpush1.bf16.msra.mxu0 %v215
  %251 = vmatprep.subr.bf16.mxu0 0
  %252 = vmatpush1.bf16.msra.mxu0 %v216
  %253 = vmatprep.subr.bf16.mxu0 0
  %254 = vmatpush1.bf16.msra.mxu0 %v217
  %255 = vmatprep.subr.bf16.mxu0 0
  %256 = vmatpush1.bf16.msra.mxu0 %v218
  %257 = vmatprep.subr.bf16.mxu0 0
  %258 = vmatpush1.bf16.msra.mxu0 %v219
  %259 = vmatprep.subr.bf16.mxu0 0
  %260 = vmatpush1.bf16.msra.mxu0 %v220
  %261 = vmatprep.subr.bf16.mxu0 0
  %262 = vmatpush1.bf16.msra.mxu0 %v221
  %263 = vmatprep.subr.bf16.mxu0 0
  %264 = vmatpush1.bf16.msra.mxu0 %v222
  %265 = vmatprep.subr.bf16.mxu0 0
  %266 = vmatpush1.bf16.msra.mxu0 %v223
  %267 = vmatprep.subr.bf16.mxu0 0
  %268 = vmatpush1.bf16.msra.mxu0 %v224
  %269 = vmatprep.subr.bf16.mxu0 0
  %270 = vmatpush1.bf16.msra.mxu0 %v225
  %271 = vmatprep.subr.bf16.mxu0 0
  %272 = vmatpush1.bf16.msra.mxu0 %v226
  %273 = vmatprep.subr.bf16.mxu0 0
  %274 = vmatpush1.bf16.msra.mxu0 %v227
  %275 = vmatprep.subr.bf16.mxu0 0
  %276 = vmatpush1.bf16.msra.mxu0 %v228
  %277 = vmatprep.mubr.bf16.mxu0 %v146
  %278 = vmatmul.mubr.bf16.gmra.mrb[0].mxu0 %v145
  %v279 = vpop.f32.mrb[0].mxu0
  %v280 = vadd.f32 %v137, %v279
  %v281 = vpop.f32.mrb[0].mxu0
  %v282 = vpop.f32.mrb[0].mxu0
  %v283 = vpop.f32.mrb[0].mxu0
  %284 = vdwg.mxu0
  %v285 = vld [vmem:[%s5] sm:$0x1]
  %v287 = vlaneseq
  %v288 = vshrl.u32 %v287, 7
  %v289 = vsub.s32 0, %v288
  %v290 = vrot.slane %v285, %v289
  %v292 = vadd.f32 %v280, %v290
  %v293 = vmax.f32 %v292, 0.0
  %v294 = vpack.c.bf16 %v293, %v293
  %v295 = vld [vmem:[%s6] sm:$0xf]
  %v296 = vld [vmem:[%s6 + $0x4] sm:$0xf]
  %v297 = vld [vmem:[%s6 + $0x8] sm:$0xf]
  %v298 = vld [vmem:[%s6 + $0xc] sm:$0xf]
  %v299 = vld [vmem:[%s6 + $0x10] sm:$0xf]
  %v300 = vld [vmem:[%s6 + $0x14] sm:$0xf]
  %v301 = vld [vmem:[%s6 + $0x18] sm:$0xf]
  %v302 = vld [vmem:[%s6 + $0x1c] sm:$0xf]
  %v303 = vld [vmem:[%s6 + $0x20] sm:$0xf]
  %v304 = vld [vmem:[%s6 + $0x24] sm:$0xf]
  %v305 = vld [vmem:[%s6 + $0x28] sm:$0xf]
  %v306 = vld [vmem:[%s6 + $0x2c] sm:$0xf]
  %v307 = vld [vmem:[%s6 + $0x30] sm:$0xf]
  %v308 = vld [vmem:[%s6 + $0x34] sm:$0xf]
  %v309 = vld [vmem:[%s6 + $0x38] sm:$0xf]
  %v310 = vld [vmem:[%s6 + $0x3c] sm:$0xf]
  %v311 = vld [vmem:[%s7] sm:$0x1]
  %v313 = vlaneseq
  %v314 = vshrl.u32 %v313, 7
  %v315 = vsub.s32 0, %v314
  %v316 = vrot.slane %v311, %v315
  %v334 = vunpack.c.l.b16 %v295
  %v335 = vunpack.c.l.b16 %v296
  %v336 = vunpack.c.l.b16 %v297
  %v337 = vunpack.c.l.b16 %v298
  %v338 = vunpack.c.l.b16 %v299
  %v339 = vunpack.c.l.b16 %v300
  %v340 = vunpack.c.l.b16 %v301
  %v341 = vunpack.c.l.b16 %v302
  %v342 = vunpack.c.l.b16 %v303
  %v343 = vunpack.c.l.b16 %v304
  %v344 = vunpack.c.l.b16 %v305
  %v345 = vunpack.c.l.b16 %v306
  %v346 = vunpack.c.l.b16 %v307
  %v347 = vunpack.c.l.b16 %v308
  %v348 = vunpack.c.l.b16 %v309
  %v349 = vunpack.c.l.b16 %v310
  %v350 = vpack.c.b16 %v335, %v334
  %v351 = vpack.c.b16 %v337, %v336
  %v352 = vpack.c.b16 %v339, %v338
  %v353 = vpack.c.b16 %v341, %v340
  %v354 = vpack.c.b16 %v343, %v342
  %v355 = vpack.c.b16 %v345, %v344
  %v356 = vpack.c.b16 %v347, %v346
  %v357 = vpack.c.b16 %v349, %v348
  %366 = vmatprep.subr.bf16.mxu0 0
  %367 = vmatpush1.bf16.msra.mxu0 %v350
  %368 = vmatprep.subr.bf16.mxu0 0
  %369 = vmatpush1.bf16.msra.mxu0 %v351
  %370 = vmatprep.subr.bf16.mxu0 0
  %371 = vmatpush1.bf16.msra.mxu0 %v352
  %372 = vmatprep.subr.bf16.mxu0 0
  %373 = vmatpush1.bf16.msra.mxu0 %v353
  %374 = vmatprep.subr.bf16.mxu0 0
  %375 = vmatpush1.bf16.msra.mxu0 %v354
  %376 = vmatprep.subr.bf16.mxu0 0
  %377 = vmatpush1.bf16.msra.mxu0 %v355
  %378 = vmatprep.subr.bf16.mxu0 0
  %379 = vmatpush1.bf16.msra.mxu0 %v356
  %380 = vmatprep.subr.bf16.mxu0 0
  %381 = vmatpush1.bf16.msra.mxu0 %v357
  %382 = vmatprep.subr.bf16.mxu0 0
  %383 = vmatpush1.bf16.msra.mxu0 0
  %384 = vmatprep.subr.bf16.mxu0 0
  %385 = vmatpush1.bf16.msra.mxu0 0
  %386 = vmatprep.subr.bf16.mxu0 0
  %387 = vmatpush1.bf16.msra.mxu0 0
  %388 = vmatprep.subr.bf16.mxu0 0
  %389 = vmatpush1.bf16.msra.mxu0 0
  %390 = vmatprep.subr.bf16.mxu0 0
  %391 = vmatpush1.bf16.msra.mxu0 0
  %392 = vmatprep.subr.bf16.mxu0 0
  %393 = vmatpush1.bf16.msra.mxu0 0
  %394 = vmatprep.subr.bf16.mxu0 0
  %395 = vmatpush1.bf16.msra.mxu0 0
  %396 = vmatprep.subr.bf16.mxu0 0
  %397 = vmatpush1.bf16.msra.mxu0 0
  %398 = vmatprep.mubr.bf16.mxu0 0
  %399 = vmatmul.mubr.bf16.gmra.mrb[0].mxu0 %v294
  %v400 = vpop.f32.mrb[0].mxu0
  %v401 = vadd.f32 %v316, %v400
  %v402 = vpop.f32.mrb[0].mxu0
  %v403 = vpop.f32.mrb[0].mxu0
  %v404 = vpop.f32.mrb[0].mxu0
  %405 = vdwg.mxu0
  %406 = vst [vmem:[%s13] sm:$0xff] %v401
  %v407 = vmul.f32 %v401, 0.5
  %v408 = vmul.f32 %v407, 1.442695
  %v409 = vpow.pop %v408
  %v410 = vld [vmem:[%s2] sm:$0xff]
  %412 = vrot.lane.b32.xlu0 %v410, 2
  %v413 = vpop.permute.xlu0 %412
  %v415 = vmul.f32 %v409, %v413
  %417 = vrot.lane.b32.xlu0 %v415, 126
  %v418 = vpop.permute.xlu0 %417
  %v420 = vadd.f32 %v401, %v418
  %v421 = vld [vmem:[%s9] sm:$0xf]
  %v422 = vld [vmem:[%s9 + $0x4] sm:$0xf]
  %v423 = vld [vmem:[%s10] sm:$0x1]
  %v425 = vlaneseq
  %v426 = vshrl.u32 %v425, 7
  %v427 = vsub.s32 0, %v426
  %v428 = vrot.slane %v423, %v427
  %v432 = vunpack.c.l.b16 %v421
  %v433 = vunpack.c.l.b16 %v422
  %v434 = vpack.c.b16 %v433, %v432
  %436 = vmatprep.subr.bf16.mxu0 0
  %437 = vmatpush1.bf16.msra.mxu0 %v434
  %438 = vmatprep.subr.bf16.mxu0 0
  %439 = vmatpush1.bf16.msra.mxu0 0
  %440 = vmatprep.subr.bf16.mxu0 0
  %441 = vmatpush1.bf16.msra.mxu0 0
  %442 = vmatprep.subr.bf16.mxu0 0
  %443 = vmatpush1.bf16.msra.mxu0 0
  %444 = vmatprep.subr.bf16.mxu0 0
  %445 = vmatpush1.bf16.msra.mxu0 0
  %446 = vmatprep.subr.bf16.mxu0 0
  %447 = vmatpush1.bf16.msra.mxu0 0
  %448 = vmatprep.subr.bf16.mxu0 0
  %449 = vmatpush1.bf16.msra.mxu0 0
  %450 = vmatprep.subr.bf16.mxu0 0
  %451 = vmatpush1.bf16.msra.mxu0 0
  %452 = vmatprep.subr.bf16.mxu0 0
  %453 = vmatpush1.bf16.msra.mxu0 0
  %454 = vmatprep.subr.bf16.mxu0 0
  %455 = vmatpush1.bf16.msra.mxu0 0
  %456 = vmatprep.subr.bf16.mxu0 0
  %457 = vmatpush1.bf16.msra.mxu0 0
  %458 = vmatprep.subr.bf16.mxu0 0
  %459 = vmatpush1.bf16.msra.mxu0 0
  %460 = vmatprep.subr.bf16.mxu0 0
  %461 = vmatpush1.bf16.msra.mxu0 0
  %462 = vmatprep.subr.bf16.mxu0 0
  %463 = vmatpush1.bf16.msra.mxu0 0
  %464 = vmatprep.subr.bf16.mxu0 0
  %465 = vmatpush1.bf16.msra.mxu0 0
  %466 = vmatprep.subr.bf16.mxu0 0
  %467 = vmatpush1.bf16.msra.mxu0 0
  %468 = vmatprep.mubr.bf16.mxu0 0
  %469 = vmatmul.mubr.bf16.gmra.mrb[0].mxu0 %v100
  %v470 = vpop.f32.mrb[0].mxu0
  %v471 = vadd.f32 %v428, %v470
  %v472 = vpop.f32.mrb[0].mxu0
  %v473 = vpop.f32.mrb[0].mxu0
  %v474 = vpop.f32.mrb[0].mxu0
  %475 = vdwg.mxu0
  %v476 = vld [vmem:[%s8] sm:$0x3]
  %478 = vset.pattern.permute.xlu0 0
  %479 = vperm.xlu0 %478, %v420
  %v480 = vpop.permute.xlu0 %479
  %v482 = vlaneseq
  %v483 = vshrl.u32 %v482, 7
  %v484 = vsub.s32 0, %v483
  %v485 = vrot.slane %v476, %v484
  %v486 = vmul.f32 %v480, %v485
  %v487 = vadd.f32 %v471, %v486
  %488 = vset.pattern.permute.xlu0 1
  %489 = vperm.xlu0 %488, %v420
  %v490 = vpop.permute.xlu0 %489
  %v492 = vlaneseq
  %v493 = vshrl.u32 %v492, 7
  %v494 = vsub.s32 1, %v493
  %v495 = vrot.slane %v476, %v494
  %v496 = vmul.f32 %v490, %v495
  %v497 = vadd.f32 %v487, %v496
  %v498 = vmax.f32 %v497, 0.0
  %v499 = vpack.c.bf16 %v498, %v498
  %v500 = vld [vmem:[%s11] sm:$0xff]
  %v501 = vld [vmem:[%s11 + $0x8] sm:$0xff]
  %v502 = vld [vmem:[%s11 + $0x10] sm:$0xff]
  %v503 = vld [vmem:[%s11 + $0x18] sm:$0xff]
  %v504 = vld [vmem:[%s11 + $0x20] sm:$0xff]
  %v505 = vld [vmem:[%s11 + $0x28] sm:$0xff]
  %v506 = vld [vmem:[%s11 + $0x30] sm:$0xff]
  %v507 = vld [vmem:[%s11 + $0x38] sm:$0xff]
  %v508 = vld [vmem:[%s11 + $0x40] sm:$0xff]
  %v509 = vld [vmem:[%s11 + $0x48] sm:$0xff]
  %v510 = vld [vmem:[%s11 + $0x50] sm:$0xff]
  %v511 = vld [vmem:[%s11 + $0x58] sm:$0xff]
  %v512 = vld [vmem:[%s11 + $0x60] sm:$0xff]
  %v513 = vld [vmem:[%s11 + $0x68] sm:$0xff]
  %v514 = vld [vmem:[%s11 + $0x70] sm:$0xff]
  %v515 = vld [vmem:[%s11 + $0x78] sm:$0xff]
  %v516 = vld [vmem:[%s12] sm:$0x3]
  %v518 = vlaneseq
  %v519 = vshrl.u32 %v518, 7
  %v520 = vsub.s32 0, %v519
  %v521 = vrot.slane %v516, %v520
  %v522 = vlaneseq
  %v523 = vshrl.u32 %v522, 7
  %v524 = vsub.s32 1, %v523
  %v525 = vrot.slane %v516, %v524
  %v544 = vunpack.c.l.b16 %v500
  %v545 = vunpack.c.h.b16 %v500
  %v546 = vunpack.c.l.b16 %v501
  %v547 = vunpack.c.h.b16 %v501
  %v548 = vunpack.c.l.b16 %v502
  %v549 = vunpack.c.h.b16 %v502
  %v550 = vunpack.c.l.b16 %v503
  %v551 = vunpack.c.h.b16 %v503
  %v552 = vunpack.c.l.b16 %v504
  %v553 = vunpack.c.h.b16 %v504
  %v554 = vunpack.c.l.b16 %v505
  %v555 = vunpack.c.h.b16 %v505
  %v556 = vunpack.c.l.b16 %v506
  %v557 = vunpack.c.h.b16 %v506
  %v558 = vunpack.c.l.b16 %v507
  %v559 = vunpack.c.h.b16 %v507
  %v560 = vunpack.c.l.b16 %v508
  %v561 = vunpack.c.h.b16 %v508
  %v562 = vunpack.c.l.b16 %v509
  %v563 = vunpack.c.h.b16 %v509
  %v564 = vunpack.c.l.b16 %v510
  %v565 = vunpack.c.h.b16 %v510
  %v566 = vunpack.c.l.b16 %v511
  %v567 = vunpack.c.h.b16 %v511
  %v568 = vunpack.c.l.b16 %v512
  %v569 = vunpack.c.h.b16 %v512
  %v570 = vunpack.c.l.b16 %v513
  %v571 = vunpack.c.h.b16 %v513
  %v572 = vunpack.c.l.b16 %v514
  %v573 = vunpack.c.h.b16 %v514
  %v574 = vunpack.c.l.b16 %v515
  %v575 = vunpack.c.h.b16 %v515
  %v576 = vpack.c.b16 %v546, %v544
  %v577 = vpack.c.b16 %v547, %v545
  %v578 = vpack.c.b16 %v550, %v548
  %v579 = vpack.c.b16 %v551, %v549
  %v580 = vpack.c.b16 %v554, %v552
  %v581 = vpack.c.b16 %v555, %v553
  %v582 = vpack.c.b16 %v558, %v556
  %v583 = vpack.c.b16 %v559, %v557
  %v584 = vpack.c.b16 %v562, %v560
  %v585 = vpack.c.b16 %v563, %v561
  %v586 = vpack.c.b16 %v566, %v564
  %v587 = vpack.c.b16 %v567, %v565
  %v588 = vpack.c.b16 %v570, %v568
  %v589 = vpack.c.b16 %v571, %v569
  %v590 = vpack.c.b16 %v574, %v572
  %v591 = vpack.c.b16 %v575, %v573
  %608 = vmatprep.subr.bf16.mxu0 %v577
  %609 = vmatpush1.bf16.msra.mxu0 %v576
  %610 = vmatprep.subr.bf16.mxu0 %v579
  %611 = vmatpush1.bf16.msra.mxu0 %v578
  %612 = vmatprep.subr.bf16.mxu0 %v581
  %613 = vmatpush1.bf16.msra.mxu0 %v580
  %614 = vmatprep.subr.bf16.mxu0 %v583
  %615 = vmatpush1.bf16.msra.mxu0 %v582
  %616 = vmatprep.subr.bf16.mxu0 %v585
  %617 = vmatpush1.bf16.msra.mxu0 %v584
  %618 = vmatprep.subr.bf16.mxu0 %v587
  %619 = vmatpush1.bf16.msra.mxu0 %v586
  %620 = vmatprep.subr.bf16.mxu0 %v589
  %621 = vmatpush1.bf16.msra.mxu0 %v588
  %622 = vmatprep.subr.bf16.mxu0 %v591
  %623 = vmatpush1.bf16.msra.mxu0 %v590
  %624 = vmatprep.subr.bf16.mxu0 0
  %625 = vmatpush1.bf16.msra.mxu0 0
  %626 = vmatprep.subr.bf16.mxu0 0
  %627 = vmatpush1.bf16.msra.mxu0 0
  %628 = vmatprep.subr.bf16.mxu0 0
  %629 = vmatpush1.bf16.msra.mxu0 0
  %630 = vmatprep.subr.bf16.mxu0 0
  %631 = vmatpush1.bf16.msra.mxu0 0
  %632 = vmatprep.subr.bf16.mxu0 0
  %633 = vmatpush1.bf16.msra.mxu0 0
  %634 = vmatprep.subr.bf16.mxu0 0
  %635 = vmatpush1.bf16.msra.mxu0 0
  %636 = vmatprep.subr.bf16.mxu0 0
  %637 = vmatpush1.bf16.msra.mxu0 0
  %638 = vmatprep.subr.bf16.mxu0 0
  %639 = vmatpush1.bf16.msra.mxu0 0
  %640 = vmatprep.mubr.bf16.mxu0 0
  %641 = vmatmul.mubr.bf16.gmra.mrb[0].mxu0 %v499
  %v642 = vpop.f32.mrb[0].mxu0
  %v643 = vadd.f32 %v521, %v642
  %v644 = vpop.f32.mrb[0].mxu0
  %v645 = vadd.f32 %v525, %v644
  %v646 = vpop.f32.mrb[0].mxu0
  %v647 = vpop.f32.mrb[0].mxu0
  %648 = vdwg.mxu0
  %v649 = vtanh.pop %v643
  %v650 = vtanh.pop %v645
  %651 = vst [vmem:[%s14] sm:$0xff] %v649
  %652 = vst [vmem:[%s14 + $0x8] sm:$0xff] %v650
  // Predicated region
  $region54: #{forward.1} parent=0 // pred_check
    _
  $region55: #{forward.1} parent=0 // pred_check_branch
    %654 = sbr.rel (0) target = $region57
  $region56: #{forward.1} parent=0 // pred_region
    _
  $region57: #{forward.1} parent=0 // pred_fallthru
    _
  // Predicated region
  $region58: #{forward.1} parent=0 // pred_check
    _
  $region59: #{forward.1} parent=0 // pred_check_branch
    %656 = sbr.rel (0) target = $region61
  $region60: #{forward.1} parent=0 // pred_region
    _
  $region61: #{forward.1} parent=0 // pred_fallthru
    _
  // Predicated region
  $region62: #{forward.1} parent=0 // pred_check
    _
  $region63: #{forward.1} parent=0 // pred_check_branch
    %658 = sbr.rel (0) target = $region65
  $region64: #{forward.1} parent=0 // pred_region
    _
  $region65: #{forward.1} parent=0 // pred_fallthru
    _
  // Predicated region
  $region66: #{forward.1} parent=0 // pred_check
    _
  $region67: #{forward.1} parent=0 // pred_check_branch
    %660 = sbr.rel (0) target = $region69
  $region68: #{forward.1} parent=0 // pred_region
    _
  $region69: #{forward.1} parent=0 // pred_fallthru
    _

</llo_original>
